<compile_context>
chip_gen: v6e
topology: v6e:2x2x1
jax: 0.10.0
libtpu: 0.0.40
codegen_flags: <defaults>
</compile_context>

<pallas_src>
import jax
import jax.numpy as jnp
from jax.experimental import pallas as pl
from jax.experimental.pallas import tpu as pltpu  # noqa: F401  (kept for TPU-specific tuning hooks)


def _make_kernel(c: int, w: int):
    """Kernel over one stacked input of shape (8, n, c*w) -> (n, (8*c+3)*w)."""
    cw = c * w
    tail_rows = min(3, 8 * c)       # s1 = first 3 rows of c1 (c1 has 8*c rows)
    tail_lanes = tail_rows * w

    def kernel(x_ref, o_ref):
        # c2[:, 0:8c, :]  <-  cat([x1..x8], dim=1): 8 direct lane-slice stores.
        parts = []
        for k in range(8):
            p = x_ref[k]                                  # (n, cw) load
            parts.append(p)
            o_ref[:, k * cw:(k + 1) * cw] = p

        # c2[:, 8c:8c+3, :]  <-  s1 = c1[:, 0:3, :]; reuse the values loaded
        # above (x1 fully, then the head of x2 for c=2).
        base = 8 * cw
        remaining = tail_lanes
        src = 0
        while remaining > 0:
            take = min(remaining, cw)
            o_ref[:, base:base + take] = parts[src][:, :take]
            base += take
            remaining -= take
            src += 1

    return kernel


def _cat_slice_cat_impl(x1, x2, x3, x4, x5, x6, x7, x8):
    n, c, w = x1.shape
    cw = c * w
    tail_rows = min(3, 8 * c)
    out_c = 8 * c + tail_rows            # 19 for c=2
    out_flat = out_c * w                 # 57 for (c, w) = (2, 3)
    itemsize = jnp.dtype(x1.dtype).itemsize

    # Single stacked, lane-flattened buffer: (8, n, c*w).  The per-input
    # reshape (n,c,w)->(n,c*w) is a row-major bitcast; the stack is one fused
    # XLA copy feeding exactly one Pallas input DMA.
    xs = jnp.stack([x.reshape(n, cw)
                    for x in (x1, x2, x3, x4, x5, x6, x7, x8)], axis=0)

    out_flat_arr = pl.pallas_call(
        _make_kernel(c, w),
        out_shape=jax.ShapeDtypeStruct((n, out_flat), x1.dtype),
        grid=(),                                          # single shot, VMEM resident
        in_specs=[pl.BlockSpec((8, n, cw), lambda: (0, 0, 0))],
        out_specs=pl.BlockSpec((n, out_flat), lambda: (0, 0)),
        cost_estimate=pl.CostEstimate(
            flops=0,
            transcendentals=0,
            bytes_accessed=(8 * n * cw + n * out_flat) * itemsize),
    )(xs)

    # Row-major bitcast back to (n, 19, w).
    return out_flat_arr.reshape(n, out_c, w)


cat_slice_cat = jax.jit(_cat_slice_cat_impl)


def _reference(x1, x2, x3, x4, x5, x6, x7, x8):
    c1 = jnp.concatenate([x1, x2, x3, x4, x5, x6, x7, x8], axis=1)
    s1 = c1[:, 0:3, :]           # v1 = c1[:, 0:HUGE] is a no-op slice
    return jnp.concatenate([c1, s1], axis=1)


if __name__ == "__main__":
    key = jax.random.PRNGKey(0)
    k1, k3, k5, k6, k7 = jax.random.split(key, 5)
    shape = (1, 2, 3)
    x1 = jax.random.normal(k1, shape, dtype=jnp.float32)
    x2 = jnp.ones(shape, dtype=jnp.float32)
    x3 = jax.random.normal(k3, shape, dtype=jnp.float32)
    x4 = jnp.ones(shape, dtype=jnp.float32)
    x5 = jax.random.normal(k5, shape, dtype=jnp.float32)
    x6 = jax.random.normal(k6, shape, dtype=jnp.float32)
    x7 = jax.random.normal(k7, shape, dtype=jnp.float32)
    x8 = jnp.ones(shape, dtype=jnp.float32)

    out = cat_slice_cat(x1, x2, x3, x4, x5, x6, x7, x8)
    jax.block_until_ready(out)

    ref = _reference(x1, x2, x3, x4, x5, x6, x7, x8)
    assert out.shape == (1, 19, 3), out.shape
    # Pure copy op -> exact equality.
    assert bool(jnp.array_equal(out, ref)), "mismatch vs reference"
    print("KERNEL_OK")
</pallas_src>

<mosaic_0001>
module attributes {stable_mosaic.version = 11 : i64} {
  func.func @kernel(%arg0: memref<8x1x6xf32, #tpu.memory_space<vmem>>, %arg1: memref<1x57xf32, #tpu.memory_space<vmem>>) attributes {dimension_semantics = [], scalar_prefetch = 0 : i64, scratch_operands = 0 : i64, tpu.core_type = #tpu.core_type<tc>} {
    %c0 = arith.constant 0 : index
    %c0_0 = arith.constant 0 : index
    %c0_1 = arith.constant 0 : index
    %0 = vector.load %arg0[%c0, %c0_0, %c0_1] : memref<8x1x6xf32, #tpu.memory_space<vmem>>, vector<1x1x6xf32>
    %1 = vector.shape_cast %0 : vector<1x1x6xf32> to vector<1x6xf32>
    %c0_2 = arith.constant 0 : index
    %c0_3 = arith.constant 0 : index
    %2 = vector.load %arg1[%c0_2, %c0_3] : memref<1x57xf32, #tpu.memory_space<vmem>>, vector<1x6xf32>
    tpu.vector_store %arg1[%c0_2, %c0_3], %1 {strides = array<i32>} : memref<1x57xf32, #tpu.memory_space<vmem>>, vector<1x6xf32>,
    %c1 = arith.constant 1 : index
    %c0_4 = arith.constant 0 : index
    %c0_5 = arith.constant 0 : index
    %3 = vector.load %arg0[%c1, %c0_4, %c0_5] : memref<8x1x6xf32, #tpu.memory_space<vmem>>, vector<1x1x6xf32>
    %4 = vector.shape_cast %3 : vector<1x1x6xf32> to vector<1x6xf32>
    %c0_6 = arith.constant 0 : index
    %c6 = arith.constant 6 : index
    %5 = vector.load %arg1[%c0_6, %c6] : memref<1x57xf32, #tpu.memory_space<vmem>>, vector<1x6xf32>
    tpu.vector_store %arg1[%c0_6, %c6], %4 {strides = array<i32>} : memref<1x57xf32, #tpu.memory_space<vmem>>, vector<1x6xf32>,
    %c2 = arith.constant 2 : index
    %c0_7 = arith.constant 0 : index
    %c0_8 = arith.constant 0 : index
    %6 = vector.load %arg0[%c2, %c0_7, %c0_8] : memref<8x1x6xf32, #tpu.memory_space<vmem>>, vector<1x1x6xf32>
    %7 = vector.shape_cast %6 : vector<1x1x6xf32> to vector<1x6xf32>
    %c0_9 = arith.constant 0 : index
    %c12 = arith.constant 12 : index
    %8 = vector.load %arg1[%c0_9, %c12] : memref<1x57xf32, #tpu.memory_space<vmem>>, vector<1x6xf32>
    tpu.vector_store %arg1[%c0_9, %c12], %7 {strides = array<i32>} : memref<1x57xf32, #tpu.memory_space<vmem>>, vector<1x6xf32>,
    %c3 = arith.constant 3 : index
    %c0_10 = arith.constant 0 : index
    %c0_11 = arith.constant 0 : index
    %9 = vector.load %arg0[%c3, %c0_10, %c0_11] : memref<8x1x6xf32, #tpu.memory_space<vmem>>, vector<1x1x6xf32>
    %10 = vector.shape_cast %9 : vector<1x1x6xf32> to vector<1x6xf32>
    %c0_12 = arith.constant 0 : index
    %c18 = arith.constant 18 : index
    %11 = vector.load %arg1[%c0_12, %c18] : memref<1x57xf32, #tpu.memory_space<vmem>>, vector<1x6xf32>
    tpu.vector_store %arg1[%c0_12, %c18], %10 {strides = array<i32>} : memref<1x57xf32, #tpu.memory_space<vmem>>, vector<1x6xf32>,
    %c4 = arith.constant 4 : index
    %c0_13 = arith.constant 0 : index
    %c0_14 = arith.constant 0 : index
    %12 = vector.load %arg0[%c4, %c0_13, %c0_14] : memref<8x1x6xf32, #tpu.memory_space<vmem>>, vector<1x1x6xf32>
    %13 = vector.shape_cast %12 : vector<1x1x6xf32> to vector<1x6xf32>
    %c0_15 = arith.constant 0 : index
    %c24 = arith.constant 24 : index
    %14 = vector.load %arg1[%c0_15, %c24] : memref<1x57xf32, #tpu.memory_space<vmem>>, vector<1x6xf32>
    tpu.vector_store %arg1[%c0_15, %c24], %13 {strides = array<i32>} : memref<1x57xf32, #tpu.memory_space<vmem>>, vector<1x6xf32>,
    %c5 = arith.constant 5 : index
    %c0_16 = arith.constant 0 : index
    %c0_17 = arith.constant 0 : index
    %15 = vector.load %arg0[%c5, %c0_16, %c0_17] : memref<8x1x6xf32, #tpu.memory_space<vmem>>, vector<1x1x6xf32>
    %16 = vector.shape_cast %15 : vector<1x1x6xf32> to vector<1x6xf32>
    %c0_18 = arith.constant 0 : index
    %c30 = arith.constant 30 : index
    %17 = vector.load %arg1[%c0_18, %c30] : memref<1x57xf32, #tpu.memory_space<vmem>>, vector<1x6xf32>
    tpu.vector_store %arg1[%c0_18, %c30], %16 {strides = array<i32>} : memref<1x57xf32, #tpu.memory_space<vmem>>, vector<1x6xf32>,
    %c6_19 = arith.constant 6 : index
    %c0_20 = arith.constant 0 : index
    %c0_21 = arith.constant 0 : index
    %18 = vector.load %arg0[%c6_19, %c0_20, %c0_21] : memref<8x1x6xf32, #tpu.memory_space<vmem>>, vector<1x1x6xf32>
    %19 = vector.shape_cast %18 : vector<1x1x6xf32> to vector<1x6xf32>
    %c0_22 = arith.constant 0 : index
    %c36 = arith.constant 36 : index
    %20 = vector.load %arg1[%c0_22, %c36] : memref<1x57xf32, #tpu.memory_space<vmem>>, vector<1x6xf32>
    tpu.vector_store %arg1[%c0_22, %c36], %19 {strides = array<i32>} : memref<1x57xf32, #tpu.memory_space<vmem>>, vector<1x6xf32>,
    %c7 = arith.constant 7 : index
    %c0_23 = arith.constant 0 : index
    %c0_24 = arith.constant 0 : index
    %21 = vector.load %arg0[%c7, %c0_23, %c0_24] : memref<8x1x6xf32, #tpu.memory_space<vmem>>, vector<1x1x6xf32>
    %22 = vector.shape_cast %21 : vector<1x1x6xf32> to vector<1x6xf32>
    %c0_25 = arith.constant 0 : index
    %c42 = arith.constant 42 : index
    %23 = vector.load %arg1[%c0_25, %c42] : memref<1x57xf32, #tpu.memory_space<vmem>>, vector<1x6xf32>
    tpu.vector_store %arg1[%c0_25, %c42], %22 {strides = array<i32>} : memref<1x57xf32, #tpu.memory_space<vmem>>, vector<1x6xf32>,
    %c0_26 = arith.constant 0 : index
    %c48 = arith.constant 48 : index
    %24 = vector.load %arg1[%c0_26, %c48] : memref<1x57xf32, #tpu.memory_space<vmem>>, vector<1x6xf32>
    tpu.vector_store %arg1[%c0_26, %c48], %1 {strides = array<i32>} : memref<1x57xf32, #tpu.memory_space<vmem>>, vector<1x6xf32>,
    %25 = vector.extract_strided_slice %4 {offsets = [0, 0], sizes = [1, 3], strides = [1, 1]} : vector<1x6xf32> to vector<1x3xf32>
    %c0_27 = arith.constant 0 : index
    %c54 = arith.constant 54 : index
    %26 = vector.load %arg1[%c0_27, %c54] : memref<1x57xf32, #tpu.memory_space<vmem>>, vector<1x3xf32>
    tpu.vector_store %arg1[%c0_27, %c54], %25 {strides = array<i32>} : memref<1x57xf32, #tpu.memory_space<vmem>>, vector<1x3xf32>,
    return
  }
}

</mosaic_0001>

<llo_original>
// kernel: _cat_slice_cat_impl.1
$region0: #{_cat_slice_cat_impl.1}
  #allocation0 [shape = 'u32[]', space=smem, size = 0x4, offset = 0x4, fixed_abs, tag = 'smem constant byte address 0x4 - core index']
  #allocation1 [shape = 'u32[144,128]{1,0:T(1,128)}', space=vmem, size = 0x12000, scoped, tag = 'internal scratch']
  %s0 = inlined_call_operand.vmem [shape: f32[8,1,6], index: 0, kind: input, shape index: {}]
  %s1 = inlined_call_operand.vmem [shape: f32[1,57], index: 1, kind: output, shape index: {}]
  %s2 = sld [smem:[#allocation0]]
  $region14: #{_cat_slice_cat_impl.1} parent=0
    _
  %s4 = ssub.s32 1, %s2
  %s5 = scalar_select 0, %s4, %s2
  // Predicated region
  $region2: #{_cat_slice_cat_impl.1} parent=0 // pred_check
    _
  $region3: #{_cat_slice_cat_impl.1} parent=0 // pred_check_branch
    %7 = sbr.rel (0) target = $region5
  $region4: #{_cat_slice_cat_impl.1} parent=0 // pred_region
    _
  $region5: #{_cat_slice_cat_impl.1} parent=0 // pred_fallthru
    _
  %v8 = vld [vmem:[%s0] sm:$0x1]
  %vm9 = vcmask 40960
  %10 = vst.msk [vmem:[%s1] sm:$0x1] %vm9, %v8
  %s11 = scalar_lea.vmem %s0, 1
  %v12 = vld [vmem:[%s11] sm:$0x1]
  %v14 = vlaneseq
  %v15 = vshrl.u32 %v14, 7
  %v16 = vsub.s32 0, %v15
  %v17 = vrot.slane %v12, %v16
  %18 = vrot.lane.b32.xlu0 %v17, 6
  %v19 = vpop.permute.xlu0 %18
  %vm21 = vcmask 90160
  %22 = vst.msk [vmem:[%s1] sm:$0x1] %vm21, %v19
  %s23 = scalar_lea.vmem %s0, 2
  %v24 = vld [vmem:[%s23] sm:$0x1]
  %v26 = vlaneseq
  %v27 = vshrl.u32 %v26, 7
  %v28 = vsub.s32 0, %v27
  %v29 = vrot.slane %v24, %v28
  %30 = vrot.lane.b32.xlu0 %v29, 12
  %v31 = vpop.permute.xlu0 %30
  %vm33 = vcmask 139360
  %34 = vst.msk [vmem:[%s1] sm:$0x1] %vm33, %v31
  %s35 = scalar_lea.vmem %s0, 3
  %v36 = vld [vmem:[%s35] sm:$0x1]
  %v38 = vlaneseq
  %v39 = vshrl.u32 %v38, 7
  %v40 = vsub.s32 0, %v39
  %v41 = vrot.slane %v36, %v40
  %42 = vrot.lane.b32.xlu0 %v41, 18
  %v43 = vpop.permute.xlu0 %42
  %vm45 = vcmask 188560
  %46 = vst.msk [vmem:[%s1] sm:$0x1] %vm45, %v43
  %s47 = scalar_lea.vmem %s0, 4
  %v48 = vld [vmem:[%s47] sm:$0x1]
  %v50 = vlaneseq
  %v51 = vshrl.u32 %v50, 7
  %v52 = vsub.s32 0, %v51
  %v53 = vrot.slane %v48, %v52
  %54 = vrot.lane.b32.xlu0 %v53, 24
  %v55 = vpop.permute.xlu0 %54
  %vm57 = vcmask 237760
  %58 = vst.msk [vmem:[%s1] sm:$0x1] %vm57, %v55
  %s59 = scalar_lea.vmem %s0, 5
  %v60 = vld [vmem:[%s59] sm:$0x1]
  %v62 = vlaneseq
  %v63 = vshrl.u32 %v62, 7
  %v64 = vsub.s32 0, %v63
  %v65 = vrot.slane %v60, %v64
  %66 = vrot.lane.b32.xlu0 %v65, 30
  %v67 = vpop.permute.xlu0 %66
  %vm69 = vcmask 286960
  %70 = vst.msk [vmem:[%s1] sm:$0x1] %vm69, %v67
  %s71 = scalar_lea.vmem %s0, 6
  %v72 = vld [vmem:[%s71] sm:$0x1]
  %v74 = vlaneseq
  %v75 = vshrl.u32 %v74, 7
  %v76 = vsub.s32 0, %v75
  %v77 = vrot.slane %v72, %v76
  %78 = vrot.lane.b32.xlu0 %v77, 36
  %v79 = vpop.permute.xlu0 %78
  %vm81 = vcmask 336160
  %82 = vst.msk [vmem:[%s1] sm:$0x1] %vm81, %v79
  %s83 = scalar_lea.vmem %s0, 7
  %v84 = vld [vmem:[%s83] sm:$0x1]
  %v86 = vlaneseq
  %v87 = vshrl.u32 %v86, 7
  %v88 = vsub.s32 0, %v87
  %v89 = vrot.slane %v84, %v88
  %90 = vrot.lane.b32.xlu0 %v89, 42
  %v91 = vpop.permute.xlu0 %90
  %vm93 = vcmask 385360
  %94 = vst.msk [vmem:[%s1] sm:$0x1] %vm93, %v91
  %v96 = vlaneseq
  %v97 = vshrl.u32 %v96, 7
  %v98 = vsub.s32 0, %v97
  %v99 = vrot.slane %v8, %v98
  %100 = vrot.lane.b32.xlu0 %v99, 48
  %v101 = vpop.permute.xlu0 %100
  %vm103 = vcmask 434560
  %104 = vst.msk [vmem:[%s1] sm:$0x1] %vm103, %v101
  %105 = vrot.lane.b32.xlu0 %v17, 54
  %v106 = vpop.permute.xlu0 %105
  %vm108 = vcmask 459184
  %109 = vst.msk [vmem:[%s1] sm:$0x1] %vm108, %v106
  // Predicated region
  $region6: #{_cat_slice_cat_impl.1} parent=0 // pred_check
    _
  $region7: #{_cat_slice_cat_impl.1} parent=0 // pred_check_branch
    %111 = sbr.rel (0) target = $region9
  $region8: #{_cat_slice_cat_impl.1} parent=0 // pred_region
    _
  $region9: #{_cat_slice_cat_impl.1} parent=0 // pred_fallthru
    _
  // Predicated region
  $region10: #{_cat_slice_cat_impl.1} parent=0 // pred_check
    _
  $region11: #{_cat_slice_cat_impl.1} parent=0 // pred_check_branch
    %113 = sbr.rel (0) target = $region13
  $region12: #{_cat_slice_cat_impl.1} parent=0 // pred_region
    _
  $region13: #{_cat_slice_cat_impl.1} parent=0 // pred_fallthru
    _

</llo_original>
